<compile_context>
chip_gen: v5e
topology: v5e:2x2
jax: 0.10.0
libtpu: 0.0.40
codegen_flags: <defaults>
</compile_context>

<pallas_src>
import jax
import jax.numpy as jnp
from jax.experimental import pallas as pl
from jax.experimental.pallas import tpu as pltpu

EPS = 1e-5
_OFFSETS = tuple((dy, dx) for dy in (-1, 0, 1) for dx in (-1, 0, 1))


def _make_kernel(N, C, H, W):
    NC, HW = N * C, H * W
    inv_cnt = 1.0 / float(N * H * W)

    def kernel(x_ref, wb1_ref, b1_ref, g1_ref, be1_ref,
               wb2_ref, b2_ref, g2_ref, be2_ref, m_ref, out_ref):
        x = x_ref[...]            # (NC, HW) lane-dense slab
        masks = m_ref[...]        # (9, HW) 3x3-tap boundary-validity masks

        def lane_shift(v, d):
            # s[:, j] = v[:, j + d] if 0 <= j + d < HW else 0
            # (static slice + concat with a zero strip: deterministic semantics, no padded scratch)
            if d == 0:
                return v
            zeros = jnp.zeros((NC, abs(d)), jnp.float32)
            if d > 0:
                return jnp.concatenate([v[:, d:], zeros], axis=1)
            return jnp.concatenate([zeros, v[:, :HW + d]], axis=1)

        def conv3x3(inp, wb, b_col):
            # Build the 9 shifted+masked taps, then one block-diagonal matmul does the channel
            # contraction for every (n, co) output row at once.
            taps = []
            for k, (dy, dx) in enumerate(_OFFSETS):
                s = lane_shift(inp, dy * W + dx)
                taps.append(s * masks[k:k + 1, :])           # mask broadcasts over the NC rows
            stacked = jnp.concatenate(taps, axis=0)          # (9*NC, HW)
            return jnp.dot(wb, stacked, preferred_element_type=jnp.float32) + b_col

        def batchnorm(y, g_ref, be_ref):
            # Batched one-pass stats: one lane-reduce for sum, one for sum-of-squares, then a
            # sublane fold over the batch. (One-pass E[x^2]-E[x]^2 is fine at this scale.)
            row_s = jnp.sum(y, axis=1, keepdims=True)         # (NC, 1)
            row_ss = jnp.sum(y * y, axis=1, keepdims=True)    # (NC, 1)
            ch_s = row_s[0:C, :]
            ch_ss = row_ss[0:C, :]
            for n in range(1, N):
                ch_s = ch_s + row_s[n * C:(n + 1) * C, :]
                ch_ss = ch_ss + row_ss[n * C:(n + 1) * C, :]
            mean = ch_s * inv_cnt                             # (C, 1)
            var = ch_ss * inv_cnt - mean * mean               # biased var (PyTorch train forward)
            scale = jax.lax.rsqrt(var + EPS) * g_ref[...]     # (C, 1)
            shift = be_ref[...] - mean * scale                # (C, 1)
            scale_r = jnp.concatenate([scale] * N, axis=0)    # (NC, 1), rows n*C+c
            shift_r = jnp.concatenate([shift] * N, axis=0)
            return y * scale_r + shift_r

        r = conv3x3(x, wb1_ref[...], b1_ref[...])
        r = jnp.maximum(batchnorm(r, g1_ref, be1_ref), 0.0)
        r = conv3x3(r, wb2_ref[...], b2_ref[...])
        r = batchnorm(r, g2_ref, be2_ref)

        out_ref[...] = x + r      # single dense (NC, HW) store

    return kernel


def _block_diag_weights(w_hwio, N, C):
    """(3,3,Cin,Cout) HWIO conv weights -> (N*C, 9*N*C) block-diagonal matmul weights.

    Row r = n*C + co, column k*N*C + n*C + ci holds w[ky, kx, ci, co] with k = ky*3 + kx,
    zero across different batch samples, so `wb @ stacked_taps` performs the channel
    contraction for every (n, co) output row at once.
    """
    taps = w_hwio.reshape(9, C, C)                 # (k, ci, co)
    taps = jnp.transpose(taps, (0, 2, 1))          # (k, co, ci)
    eye = jnp.eye(N, dtype=w_hwio.dtype)
    blocks = jnp.einsum('nm,kab->knamb', eye, taps).reshape(9, N * C, N * C)
    return jnp.transpose(blocks, (1, 0, 2)).reshape(N * C, 9 * N * C)


def _boundary_masks(H, W):
    """(9, H*W) validity masks for the 3x3 taps, in (dy, dx) row-major order."""
    hh = jnp.arange(H)[:, None]
    ww = jnp.arange(W)[None, :]
    ms = []
    for dy, dx in _OFFSETS:
        valid = ((hh + dy >= 0) & (hh + dy < H) & (ww + dx >= 0) & (ww + dx < W))
        ms.append(valid.reshape(-1))
    return jnp.stack(ms, axis=0).astype(jnp.float32)


def residual_block(x_nchw, params):
    """Forward pass of ResidualBlock (training-mode BN). Input/output in PyTorch NCHW layout."""
    w1, b1, g1, be1, w2, b2, g2, be2 = params
    x = x_nchw.astype(jnp.float32)
    N, C, H, W = x.shape
    NC, HW = N * C, H * W

    x2d = x.reshape(NC, HW)                        # metadata-only reshape of contiguous NCHW
    wb1 = _block_diag_weights(w1, N, C)            # tiny (144-weight) repack, done once
    wb2 = _block_diag_weights(w2, N, C)
    b1c = jnp.tile(b1, (N,)).reshape(NC, 1)
    b2c = jnp.tile(b2, (N,)).reshape(NC, 1)
    g1c, be1c = g1.reshape(C, 1), be1.reshape(C, 1)
    g2c, be2c = g2.reshape(C, 1), be2.reshape(C, 1)
    masks = _boundary_masks(H, W)

    vmem = pl.BlockSpec(memory_space=pltpu.MemorySpace.VMEM)
    out2d = pl.pallas_call(
        _make_kernel(N, C, H, W),
        out_shape=jax.ShapeDtypeStruct((NC, HW), jnp.float32),
        in_specs=[vmem] * 10,
        out_specs=vmem,
        compiler_params=pltpu.CompilerParams(vmem_limit_bytes=32 * 1024 * 1024),
    )(x2d, wb1, b1c, g1c, be1c, wb2, b2c, g2c, be2c, masks)

    # (N*C, H*W) -> (N, C, H, W) is a metadata-only reshape (row-major NCHW order).
    return out2d.reshape(N, C, H, W)


def init_params(key, channels):
    k1, k2, k3, k4 = jax.random.split(key, 4)
    C = channels
    w1 = jax.random.normal(k1, (3, 3, C, C), jnp.float32) * 0.1   # HWIO
    b1 = jax.random.normal(k2, (C,), jnp.float32) * 0.1
    w2 = jax.random.normal(k3, (3, 3, C, C), jnp.float32) * 0.1
    b2 = jax.random.normal(k4, (C,), jnp.float32) * 0.1
    # BatchNorm2d default init: weight=1, bias=0
    g1 = jnp.ones((C,), jnp.float32)
    be1 = jnp.zeros((C,), jnp.float32)
    g2 = jnp.ones((C,), jnp.float32)
    be2 = jnp.zeros((C,), jnp.float32)
    return (w1, b1, g1, be1, w2, b2, g2, be2)


def _reference(x_nchw, params):
    """Plain-JAX reference (same semantics) for a sanity check."""
    w1, b1, g1, be1, w2, b2, g2, be2 = params
    x = jnp.transpose(x_nchw, (0, 2, 3, 1)).astype(jnp.float32)

    def conv(inp, w, b):
        return jax.lax.conv_general_dilated(
            inp, w, (1, 1), ((1, 1), (1, 1)),
            dimension_numbers=('NHWC', 'HWIO', 'NHWC')) + b

    def bn(y, g, be):
        mean = jnp.mean(y, axis=(0, 1, 2), keepdims=True)
        var = jnp.mean((y - mean) ** 2, axis=(0, 1, 2), keepdims=True)
        return (y - mean) / jnp.sqrt(var + EPS) * g + be

    r = jnp.maximum(bn(conv(x, w1, b1), g1, be1), 0.0)
    r = bn(conv(r, w2, b2), g2, be2)
    return jnp.transpose(x + r, (0, 3, 1, 2))


if __name__ == "__main__":
    key = jax.random.PRNGKey(0)
    kx, kp = jax.random.split(key)

    N, C, H, W = 2, 4, 16, 16          # small NCHW input, like the PyTorch module
    x = jax.random.normal(kx, (N, C, H, W), jnp.float32)
    params = init_params(kp, C)

    out = jax.block_until_ready(residual_block(x, params))
    ref = jax.block_until_ready(_reference(x, params))

    assert out.shape == (N, C, H, W)
    max_err = float(jnp.max(jnp.abs(out - ref)))
    assert jnp.allclose(out, ref, atol=1e-2, rtol=1e-2), max_err

    print("KERNEL_OK")
</pallas_src>

<mosaic_0001>
module attributes {stable_mosaic.version = 11 : i64} {
  func.func @kernel(%arg0: memref<8x256xf32, #tpu.memory_space<vmem>>, %arg1: memref<8x72xf32, #tpu.memory_space<vmem>>, %arg2: memref<8x1xf32, #tpu.memory_space<vmem>>, %arg3: memref<4x1xf32, #tpu.memory_space<vmem>>, %arg4: memref<4x1xf32, #tpu.memory_space<vmem>>, %arg5: memref<8x72xf32, #tpu.memory_space<vmem>>, %arg6: memref<8x1xf32, #tpu.memory_space<vmem>>, %arg7: memref<4x1xf32, #tpu.memory_space<vmem>>, %arg8: memref<4x1xf32, #tpu.memory_space<vmem>>, %arg9: memref<9x256xf32, #tpu.memory_space<vmem>>, %arg10: memref<8x256xf32, #tpu.memory_space<vmem>>) attributes {dimension_semantics = [], scalar_prefetch = 0 : i64, scratch_operands = 0 : i64, tpu.core_type = #tpu.core_type<tc>} {
    %c0 = arith.constant 0 : index
    %c0_0 = arith.constant 0 : index
    %0 = vector.load %arg0[%c0, %c0_0] : memref<8x256xf32, #tpu.memory_space<vmem>>, vector<8x256xf32>
    %c0_1 = arith.constant 0 : index
    %c0_2 = arith.constant 0 : index
    %1 = vector.load %arg9[%c0_1, %c0_2] : memref<9x256xf32, #tpu.memory_space<vmem>>, vector<9x256xf32>
    %c0_3 = arith.constant 0 : index
    %c0_4 = arith.constant 0 : index
    %2 = vector.load %arg1[%c0_3, %c0_4] : memref<8x72xf32, #tpu.memory_space<vmem>>, vector<8x72xf32>
    %c0_5 = arith.constant 0 : index
    %c0_6 = arith.constant 0 : index
    %3 = vector.load %arg2[%c0_5, %c0_6] : memref<8x1xf32, #tpu.memory_space<vmem>>, vector<8x1xf32>
    %cst = arith.constant 0.000000e+00 : f32
    %4 = vector.broadcast %cst : f32 to vector<8x17xf32>
    %5 = vector.extract_strided_slice %0 {offsets = [0, 0], sizes = [8, 239], strides = [1, 1]} : vector<8x256xf32> to vector<8x239xf32>
    %6 = tpu.concatenate %4, %5 in 1 : vector<8x17xf32>, vector<8x239xf32> -> vector<8x256xf32>
    %7 = vector.extract_strided_slice %1 {offsets = [0, 0], sizes = [1, 256], strides = [1, 1]} : vector<9x256xf32> to vector<1x256xf32>
    %8 = vector.broadcast %7 : vector<1x256xf32> to vector<8x256xf32>
    %9 = arith.mulf %6, %8 : vector<8x256xf32>
    %cst_7 = arith.constant 0.000000e+00 : f32
    %10 = vector.broadcast %cst_7 : f32 to vector<8x16xf32>
    %11 = vector.extract_strided_slice %0 {offsets = [0, 0], sizes = [8, 240], strides = [1, 1]} : vector<8x256xf32> to vector<8x240xf32>
    %12 = tpu.concatenate %10, %11 in 1 : vector<8x16xf32>, vector<8x240xf32> -> vector<8x256xf32>
    %13 = vector.extract_strided_slice %1 {offsets = [1, 0], sizes = [1, 256], strides = [1, 1]} : vector<9x256xf32> to vector<1x256xf32>
    %14 = vector.broadcast %13 : vector<1x256xf32> to vector<8x256xf32>
    %15 = arith.mulf %12, %14 : vector<8x256xf32>
    %cst_8 = arith.constant 0.000000e+00 : f32
    %16 = vector.broadcast %cst_8 : f32 to vector<8x15xf32>
    %17 = vector.extract_strided_slice %0 {offsets = [0, 0], sizes = [8, 241], strides = [1, 1]} : vector<8x256xf32> to vector<8x241xf32>
    %18 = tpu.concatenate %16, %17 in 1 : vector<8x15xf32>, vector<8x241xf32> -> vector<8x256xf32>
    %19 = vector.extract_strided_slice %1 {offsets = [2, 0], sizes = [1, 256], strides = [1, 1]} : vector<9x256xf32> to vector<1x256xf32>
    %20 = vector.broadcast %19 : vector<1x256xf32> to vector<8x256xf32>
    %21 = arith.mulf %18, %20 : vector<8x256xf32>
    %cst_9 = arith.constant 0.000000e+00 : f32
    %22 = vector.broadcast %cst_9 : f32 to vector<8x1xf32>
    %23 = vector.extract_strided_slice %0 {offsets = [0, 0], sizes = [8, 255], strides = [1, 1]} : vector<8x256xf32> to vector<8x255xf32>
    %24 = tpu.concatenate %22, %23 in 1 : vector<8x1xf32>, vector<8x255xf32> -> vector<8x256xf32>
    %25 = vector.extract_strided_slice %1 {offsets = [3, 0], sizes = [1, 256], strides = [1, 1]} : vector<9x256xf32> to vector<1x256xf32>
    %26 = vector.broadcast %25 : vector<1x256xf32> to vector<8x256xf32>
    %27 = arith.mulf %24, %26 : vector<8x256xf32>
    %28 = vector.extract_strided_slice %1 {offsets = [4, 0], sizes = [1, 256], strides = [1, 1]} : vector<9x256xf32> to vector<1x256xf32>
    %29 = vector.broadcast %28 : vector<1x256xf32> to vector<8x256xf32>
    %30 = arith.mulf %0, %29 : vector<8x256xf32>
    %cst_10 = arith.constant 0.000000e+00 : f32
    %31 = vector.broadcast %cst_10 : f32 to vector<8x1xf32>
    %32 = vector.extract_strided_slice %0 {offsets = [0, 1], sizes = [8, 255], strides = [1, 1]} : vector<8x256xf32> to vector<8x255xf32>
    %33 = tpu.concatenate %32, %31 in 1 : vector<8x255xf32>, vector<8x1xf32> -> vector<8x256xf32>
    %34 = vector.extract_strided_slice %1 {offsets = [5, 0], sizes = [1, 256], strides = [1, 1]} : vector<9x256xf32> to vector<1x256xf32>
    %35 = vector.broadcast %34 : vector<1x256xf32> to vector<8x256xf32>
    %36 = arith.mulf %33, %35 : vector<8x256xf32>
    %cst_11 = arith.constant 0.000000e+00 : f32
    %37 = vector.broadcast %cst_11 : f32 to vector<8x15xf32>
    %38 = vector.extract_strided_slice %0 {offsets = [0, 15], sizes = [8, 241], strides = [1, 1]} : vector<8x256xf32> to vector<8x241xf32>
    %39 = tpu.concatenate %38, %37 in 1 : vector<8x241xf32>, vector<8x15xf32> -> vector<8x256xf32>
    %40 = vector.extract_strided_slice %1 {offsets = [6, 0], sizes = [1, 256], strides = [1, 1]} : vector<9x256xf32> to vector<1x256xf32>
    %41 = vector.broadcast %40 : vector<1x256xf32> to vector<8x256xf32>
    %42 = arith.mulf %39, %41 : vector<8x256xf32>
    %cst_12 = arith.constant 0.000000e+00 : f32
    %43 = vector.broadcast %cst_12 : f32 to vector<8x16xf32>
    %44 = vector.extract_strided_slice %0 {offsets = [0, 16], sizes = [8, 240], strides = [1, 1]} : vector<8x256xf32> to vector<8x240xf32>
    %45 = tpu.concatenate %44, %43 in 1 : vector<8x240xf32>, vector<8x16xf32> -> vector<8x256xf32>
    %46 = vector.extract_strided_slice %1 {offsets = [7, 0], sizes = [1, 256], strides = [1, 1]} : vector<9x256xf32> to vector<1x256xf32>
    %47 = vector.broadcast %46 : vector<1x256xf32> to vector<8x256xf32>
    %48 = arith.mulf %45, %47 : vector<8x256xf32>
    %cst_13 = arith.constant 0.000000e+00 : f32
    %49 = vector.broadcast %cst_13 : f32 to vector<8x17xf32>
    %50 = vector.extract_strided_slice %0 {offsets = [0, 17], sizes = [8, 239], strides = [1, 1]} : vector<8x256xf32> to vector<8x239xf32>
    %51 = tpu.concatenate %50, %49 in 1 : vector<8x239xf32>, vector<8x17xf32> -> vector<8x256xf32>
    %52 = vector.extract_strided_slice %1 {offsets = [8, 0], sizes = [1, 256], strides = [1, 1]} : vector<9x256xf32> to vector<1x256xf32>
    %53 = vector.broadcast %52 : vector<1x256xf32> to vector<8x256xf32>
    %54 = arith.mulf %51, %53 : vector<8x256xf32>
    %55 = tpu.concatenate %9, %15, %21, %27, %30, %36, %42, %48, %54 in 0 : vector<8x256xf32>, vector<8x256xf32>, vector<8x256xf32>, vector<8x256xf32>, vector<8x256xf32>, vector<8x256xf32>, vector<8x256xf32>, vector<8x256xf32>, vector<8x256xf32> -> vector<72x256xf32>
    %cst_14 = arith.constant dense<0.000000e+00> : vector<8x256xf32>
    %56 = tpu.matmul %2, %55, %cst_14 {dimension_numbers = #tpu.dot_dimension_numbers<[1], [0], [0], [1], [0, 0, 1, 1], [], []>} : vector<8x72xf32>, vector<72x256xf32>, vector<8x256xf32> -> vector<8x256xf32>
    %57 = vector.broadcast %3 : vector<8x1xf32> to vector<8x256xf32>
    %58 = arith.addf %56, %57 : vector<8x256xf32>
    %cst_15 = arith.constant dense<0.000000e+00> : vector<8xf32>
    %59 = vector.multi_reduction <add>, %58, %cst_15 [1] : vector<8x256xf32> to vector<8xf32>
    %60 = vector.shape_cast %59 : vector<8xf32> to vector<8x1xf32>
    %61 = arith.mulf %58, %58 : vector<8x256xf32>
    %cst_16 = arith.constant dense<0.000000e+00> : vector<8xf32>
    %62 = vector.multi_reduction <add>, %61, %cst_16 [1] : vector<8x256xf32> to vector<8xf32>
    %63 = vector.shape_cast %62 : vector<8xf32> to vector<8x1xf32>
    %64 = vector.extract_strided_slice %60 {offsets = [0, 0], sizes = [4, 1], strides = [1, 1]} : vector<8x1xf32> to vector<4x1xf32>
    %65 = vector.extract_strided_slice %63 {offsets = [0, 0], sizes = [4, 1], strides = [1, 1]} : vector<8x1xf32> to vector<4x1xf32>
    %66 = vector.extract_strided_slice %60 {offsets = [4, 0], sizes = [4, 1], strides = [1, 1]} : vector<8x1xf32> to vector<4x1xf32>
    %67 = arith.addf %64, %66 : vector<4x1xf32>
    %68 = vector.extract_strided_slice %63 {offsets = [4, 0], sizes = [4, 1], strides = [1, 1]} : vector<8x1xf32> to vector<4x1xf32>
    %69 = arith.addf %65, %68 : vector<4x1xf32>
    %cst_17 = arith.constant 0.001953125 : f32
    %70 = vector.broadcast %cst_17 : f32 to vector<4x1xf32>
    %71 = arith.mulf %67, %70 : vector<4x1xf32>
    %cst_18 = arith.constant 0.001953125 : f32
    %72 = vector.broadcast %cst_18 : f32 to vector<4x1xf32>
    %73 = arith.mulf %69, %72 : vector<4x1xf32>
    %74 = arith.mulf %71, %71 : vector<4x1xf32>
    %75 = arith.subf %73, %74 : vector<4x1xf32>
    %cst_19 = arith.constant 9.99999974E-6 : f32
    %76 = vector.broadcast %cst_19 : f32 to vector<4x1xf32>
    %77 = arith.addf %75, %76 : vector<4x1xf32>
    %78 = math.rsqrt %77 : vector<4x1xf32>
    %c0_20 = arith.constant 0 : index
    %c0_21 = arith.constant 0 : index
    %79 = vector.load %arg3[%c0_20, %c0_21] : memref<4x1xf32, #tpu.memory_space<vmem>>, vector<4x1xf32>
    %80 = arith.mulf %78, %79 : vector<4x1xf32>
    %c0_22 = arith.constant 0 : index
    %c0_23 = arith.constant 0 : index
    %81 = vector.load %arg4[%c0_22, %c0_23] : memref<4x1xf32, #tpu.memory_space<vmem>>, vector<4x1xf32>
    %82 = arith.mulf %71, %80 : vector<4x1xf32>
    %83 = arith.subf %81, %82 : vector<4x1xf32>
    %84 = tpu.concatenate %80, %80 in 0 : vector<4x1xf32>, vector<4x1xf32> -> vector<8x1xf32>
    %85 = tpu.concatenate %83, %83 in 0 : vector<4x1xf32>, vector<4x1xf32> -> vector<8x1xf32>
    %86 = vector.broadcast %84 : vector<8x1xf32> to vector<8x256xf32>
    %87 = arith.mulf %58, %86 : vector<8x256xf32>
    %88 = vector.broadcast %85 : vector<8x1xf32> to vector<8x256xf32>
    %89 = arith.addf %87, %88 : vector<8x256xf32>
    %cst_24 = arith.constant 0.000000e+00 : f32
    %90 = vector.broadcast %cst_24 : f32 to vector<8x256xf32>
    %91 = arith.maximumf %89, %90 : vector<8x256xf32>
    %c0_25 = arith.constant 0 : index
    %c0_26 = arith.constant 0 : index
    %92 = vector.load %arg5[%c0_25, %c0_26] : memref<8x72xf32, #tpu.memory_space<vmem>>, vector<8x72xf32>
    %c0_27 = arith.constant 0 : index
    %c0_28 = arith.constant 0 : index
    %93 = vector.load %arg6[%c0_27, %c0_28] : memref<8x1xf32, #tpu.memory_space<vmem>>, vector<8x1xf32>
    %cst_29 = arith.constant 0.000000e+00 : f32
    %94 = vector.broadcast %cst_29 : f32 to vector<8x17xf32>
    %95 = vector.extract_strided_slice %91 {offsets = [0, 0], sizes = [8, 239], strides = [1, 1]} : vector<8x256xf32> to vector<8x239xf32>
    %96 = tpu.concatenate %94, %95 in 1 : vector<8x17xf32>, vector<8x239xf32> -> vector<8x256xf32>
    %97 = vector.extract_strided_slice %1 {offsets = [0, 0], sizes = [1, 256], strides = [1, 1]} : vector<9x256xf32> to vector<1x256xf32>
    %98 = vector.broadcast %97 : vector<1x256xf32> to vector<8x256xf32>
    %99 = arith.mulf %96, %98 : vector<8x256xf32>
    %cst_30 = arith.constant 0.000000e+00 : f32
    %100 = vector.broadcast %cst_30 : f32 to vector<8x16xf32>
    %101 = vector.extract_strided_slice %91 {offsets = [0, 0], sizes = [8, 240], strides = [1, 1]} : vector<8x256xf32> to vector<8x240xf32>
    %102 = tpu.concatenate %100, %101 in 1 : vector<8x16xf32>, vector<8x240xf32> -> vector<8x256xf32>
    %103 = vector.extract_strided_slice %1 {offsets = [1, 0], sizes = [1, 256], strides = [1, 1]} : vector<9x256xf32> to vector<1x256xf32>
    %104 = vector.broadcast %103 : vector<1x256xf32> to vector<8x256xf32>
    %105 = arith.mulf %102, %104 : vector<8x256xf32>
    %cst_31 = arith.constant 0.000000e+00 : f32
    %106 = vector.broadcast %cst_31 : f32 to vector<8x15xf32>
    %107 = vector.extract_strided_slice %91 {offsets = [0, 0], sizes = [8, 241], strides = [1, 1]} : vector<8x256xf32> to vector<8x241xf32>
    %108 = tpu.concatenate %106, %107 in 1 : vector<8x15xf32>, vector<8x241xf32> -> vector<8x256xf32>
    %109 = vector.extract_strided_slice %1 {offsets = [2, 0], sizes = [1, 256], strides = [1, 1]} : vector<9x256xf32> to vector<1x256xf32>
    %110 = vector.broadcast %109 : vector<1x256xf32> to vector<8x256xf32>
    %111 = arith.mulf %108, %110 : vector<8x256xf32>
    %cst_32 = arith.constant 0.000000e+00 : f32
    %112 = vector.broadcast %cst_32 : f32 to vector<8x1xf32>
    %113 = vector.extract_strided_slice %91 {offsets = [0, 0], sizes = [8, 255], strides = [1, 1]} : vector<8x256xf32> to vector<8x255xf32>
    %114 = tpu.concatenate %112, %113 in 1 : vector<8x1xf32>, vector<8x255xf32> -> vector<8x256xf32>
    %115 = vector.extract_strided_slice %1 {offsets = [3, 0], sizes = [1, 256], strides = [1, 1]} : vector<9x256xf32> to vector<1x256xf32>
    %116 = vector.broadcast %115 : vector<1x256xf32> to vector<8x256xf32>
    %117 = arith.mulf %114, %116 : vector<8x256xf32>
    %118 = vector.extract_strided_slice %1 {offsets = [4, 0], sizes = [1, 256], strides = [1, 1]} : vector<9x256xf32> to vector<1x256xf32>
    %119 = vector.broadcast %118 : vector<1x256xf32> to vector<8x256xf32>
    %120 = arith.mulf %91, %119 : vector<8x256xf32>
    %cst_33 = arith.constant 0.000000e+00 : f32
    %121 = vector.broadcast %cst_33 : f32 to vector<8x1xf32>
    %122 = vector.extract_strided_slice %91 {offsets = [0, 1], sizes = [8, 255], strides = [1, 1]} : vector<8x256xf32> to vector<8x255xf32>
    %123 = tpu.concatenate %122, %121 in 1 : vector<8x255xf32>, vector<8x1xf32> -> vector<8x256xf32>
    %124 = vector.extract_strided_slice %1 {offsets = [5, 0], sizes = [1, 256], strides = [1, 1]} : vector<9x256xf32> to vector<1x256xf32>
    %125 = vector.broadcast %124 : vector<1x256xf32> to vector<8x256xf32>
    %126 = arith.mulf %123, %125 : vector<8x256xf32>
    %cst_34 = arith.constant 0.000000e+00 : f32
    %127 = vector.broadcast %cst_34 : f32 to vector<8x15xf32>
    %128 = vector.extract_strided_slice %91 {offsets = [0, 15], sizes = [8, 241], strides = [1, 1]} : vector<8x256xf32> to vector<8x241xf32>
    %129 = tpu.concatenate %128, %127 in 1 : vector<8x241xf32>, vector<8x15xf32> -> vector<8x256xf32>
    %130 = vector.extract_strided_slice %1 {offsets = [6, 0], sizes = [1, 256], strides = [1, 1]} : vector<9x256xf32> to vector<1x256xf32>
    %131 = vector.broadcast %130 : vector<1x256xf32> to vector<8x256xf32>
    %132 = arith.mulf %129, %131 : vector<8x256xf32>
    %cst_35 = arith.constant 0.000000e+00 : f32
    %133 = vector.broadcast %cst_35 : f32 to vector<8x16xf32>
    %134 = vector.extract_strided_slice %91 {offsets = [0, 16], sizes = [8, 240], strides = [1, 1]} : vector<8x256xf32> to vector<8x240xf32>
    %135 = tpu.concatenate %134, %133 in 1 : vector<8x240xf32>, vector<8x16xf32> -> vector<8x256xf32>
    %136 = vector.extract_strided_slice %1 {offsets = [7, 0], sizes = [1, 256], strides = [1, 1]} : vector<9x256xf32> to vector<1x256xf32>
    %137 = vector.broadcast %136 : vector<1x256xf32> to vector<8x256xf32>
    %138 = arith.mulf %135, %137 : vector<8x256xf32>
    %cst_36 = arith.constant 0.000000e+00 : f32
    %139 = vector.broadcast %cst_36 : f32 to vector<8x17xf32>
    %140 = vector.extract_strided_slice %91 {offsets = [0, 17], sizes = [8, 239], strides = [1, 1]} : vector<8x256xf32> to vector<8x239xf32>
    %141 = tpu.concatenate %140, %139 in 1 : vector<8x239xf32>, vector<8x17xf32> -> vector<8x256xf32>
    %142 = vector.extract_strided_slice %1 {offsets = [8, 0], sizes = [1, 256], strides = [1, 1]} : vector<9x256xf32> to vector<1x256xf32>
    %143 = vector.broadcast %142 : vector<1x256xf32> to vector<8x256xf32>
    %144 = arith.mulf %141, %143 : vector<8x256xf32>
    %145 = tpu.concatenate %99, %105, %111, %117, %120, %126, %132, %138, %144 in 0 : vector<8x256xf32>, vector<8x256xf32>, vector<8x256xf32>, vector<8x256xf32>, vector<8x256xf32>, vector<8x256xf32>, vector<8x256xf32>, vector<8x256xf32>, vector<8x256xf32> -> vector<72x256xf32>
    %cst_37 = arith.constant dense<0.000000e+00> : vector<8x256xf32>
    %146 = tpu.matmul %92, %145, %cst_37 {dimension_numbers = #tpu.dot_dimension_numbers<[1], [0], [0], [1], [0, 0, 1, 1], [], []>} : vector<8x72xf32>, vector<72x256xf32>, vector<8x256xf32> -> vector<8x256xf32>
    %147 = vector.broadcast %93 : vector<8x1xf32> to vector<8x256xf32>
    %148 = arith.addf %146, %147 : vector<8x256xf32>
    %cst_38 = arith.constant dense<0.000000e+00> : vector<8xf32>
    %149 = vector.multi_reduction <add>, %148, %cst_38 [1] : vector<8x256xf32> to vector<8xf32>
    %150 = vector.shape_cast %149 : vector<8xf32> to vector<8x1xf32>
    %151 = arith.mulf %148, %148 : vector<8x256xf32>
    %cst_39 = arith.constant dense<0.000000e+00> : vector<8xf32>
    %152 = vector.multi_reduction <add>, %151, %cst_39 [1] : vector<8x256xf32> to vector<8xf32>
    %153 = vector.shape_cast %152 : vector<8xf32> to vector<8x1xf32>
    %154 = vector.extract_strided_slice %150 {offsets = [0, 0], sizes = [4, 1], strides = [1, 1]} : vector<8x1xf32> to vector<4x1xf32>
    %155 = vector.extract_strided_slice %153 {offsets = [0, 0], sizes = [4, 1], strides = [1, 1]} : vector<8x1xf32> to vector<4x1xf32>
    %156 = vector.extract_strided_slice %150 {offsets = [4, 0], sizes = [4, 1], strides = [1, 1]} : vector<8x1xf32> to vector<4x1xf32>
    %157 = arith.addf %154, %156 : vector<4x1xf32>
    %158 = vector.extract_strided_slice %153 {offsets = [4, 0], sizes = [4, 1], strides = [1, 1]} : vector<8x1xf32> to vector<4x1xf32>
    %159 = arith.addf %155, %158 : vector<4x1xf32>
    %cst_40 = arith.constant 0.001953125 : f32
    %160 = vector.broadcast %cst_40 : f32 to vector<4x1xf32>
    %161 = arith.mulf %157, %160 : vector<4x1xf32>
    %cst_41 = arith.constant 0.001953125 : f32
    %162 = vector.broadcast %cst_41 : f32 to vector<4x1xf32>
    %163 = arith.mulf %159, %162 : vector<4x1xf32>
    %164 = arith.mulf %161, %161 : vector<4x1xf32>
    %165 = arith.subf %163, %164 : vector<4x1xf32>
    %cst_42 = arith.constant 9.99999974E-6 : f32
    %166 = vector.broadcast %cst_42 : f32 to vector<4x1xf32>
    %167 = arith.addf %165, %166 : vector<4x1xf32>
    %168 = math.rsqrt %167 : vector<4x1xf32>
    %c0_43 = arith.constant 0 : index
    %c0_44 = arith.constant 0 : index
    %169 = vector.load %arg7[%c0_43, %c0_44] : memref<4x1xf32, #tpu.memory_space<vmem>>, vector<4x1xf32>
    %170 = arith.mulf %168, %169 : vector<4x1xf32>
    %c0_45 = arith.constant 0 : index
    %c0_46 = arith.constant 0 : index
    %171 = vector.load %arg8[%c0_45, %c0_46] : memref<4x1xf32, #tpu.memory_space<vmem>>, vector<4x1xf32>
    %172 = arith.mulf %161, %170 : vector<4x1xf32>
    %173 = arith.subf %171, %172 : vector<4x1xf32>
    %174 = tpu.concatenate %170, %170 in 0 : vector<4x1xf32>, vector<4x1xf32> -> vector<8x1xf32>
    %175 = tpu.concatenate %173, %173 in 0 : vector<4x1xf32>, vector<4x1xf32> -> vector<8x1xf32>
    %176 = vector.broadcast %174 : vector<8x1xf32> to vector<8x256xf32>
    %177 = arith.mulf %148, %176 : vector<8x256xf32>
    %178 = vector.broadcast %175 : vector<8x1xf32> to vector<8x256xf32>
    %179 = arith.addf %177, %178 : vector<8x256xf32>
    %180 = arith.addf %0, %179 : vector<8x256xf32>
    %c0_47 = arith.constant 0 : index
    %c0_48 = arith.constant 0 : index
    %181 = vector.load %arg10[%c0_47, %c0_48] : memref<8x256xf32, #tpu.memory_space<vmem>>, vector<8x256xf32>
    tpu.vector_store %arg10[%c0_47, %c0_48], %180 {strides = array<i32>} : memref<8x256xf32, #tpu.memory_space<vmem>>, vector<8x256xf32>,
    return
  }
}

</mosaic_0001>

<llo_original>
// kernel: tpu_custom_call.1
$region0: #{tpu_custom_call.1}
  #allocation0 [shape = 'u32[]', space=smem, size = 0x4, offset = 0x4, fixed_abs, tag = 'smem constant byte address 0x4 - core index']
  #allocation1 [shape = 'u32[72,128]{1,0:T(1,128)}', space=vmem, size = 0x9000, scoped, tag = 'internal scratch']
  %s0 = inlined_call_operand.vmem [shape: f32[8,256], index: 0, kind: input, shape index: {}]
  %s1 = inlined_call_operand.hbm [shape: f32[8,72], index: 1, kind: input, shape index: {}]
  %s2 = inlined_call_operand.vmem [shape: f32[8,1], index: 2, kind: input, shape index: {}]
  %s3 = inlined_call_operand.vmem [shape: f32[4,1], index: 3, kind: input, shape index: {}]
  %s4 = inlined_call_operand.vmem [shape: f32[4,1], index: 4, kind: input, shape index: {}]
  %s5 = inlined_call_operand.hbm [shape: f32[8,72], index: 5, kind: input, shape index: {}]
  %s6 = inlined_call_operand.vmem [shape: f32[8,1], index: 6, kind: input, shape index: {}]
  %s7 = inlined_call_operand.vmem [shape: f32[4,1], index: 7, kind: input, shape index: {}]
  %s8 = inlined_call_operand.vmem [shape: f32[4,1], index: 8, kind: input, shape index: {}]
  %s9 = inlined_call_operand.hbm [shape: f32[9,256], index: 9, kind: input, shape index: {}]
  %s10 = inlined_call_operand.hbm [shape: f32[8,256], index: 10, kind: output, shape index: {}]
  %s11 = sld [smem:[#allocation0]]
  $region62: #{tpu_custom_call.1} parent=0
    _
  %s13 = ssub.s32 1, %s11
  %s14 = scalar_select 0, %s13, %s11
  $region1: #{tpu_custom_call.1} parent=0
    #allocation2 [shape = 'u8[4096]{0}', space=vmem, size = 0x1000, scoped, tag = 'input window, operand 1, single buffered']
    #allocation3 [shape = 's32[1]{0}', space=sflag, size = 0x4, scoped, tag = 'scoped memory for tpu_custom_call.1']
    #allocation4 [shape = 's32[1]{0}', space=sflag, size = 0x4, scoped, tag = 'scoped memory for tpu_custom_call.1']
    #allocation5 [shape = 'u8[4096]{0}', space=vmem, size = 0x1000, scoped, tag = 'input window, operand 5, single buffered']
    #allocation6 [shape = 's32[1]{0}', space=sflag, size = 0x4, scoped, tag = 'scoped memory for tpu_custom_call.1']
    #allocation7 [shape = 'u8[16384]{0}', space=vmem, size = 0x4000, scoped, tag = 'input window, operand 9, single buffered']
    #allocation8 [shape = 'u8[8192]{0}', space=vmem, size = 0x2000, scoped, tag = 'output window, operand 0, single buffered']
    %15 = vsyncpa [#allocation3], 0
    %16 = vsyncpa [#allocation6], 0
    %17 = vsyncpa [#allocation4], 0
    // Predicated region
    $region2: #{tpu_custom_call.1} parent=1 // pred_check
      _
    $region3: #{tpu_custom_call.1} parent=1 // pred_check_branch
      %19 = sbr.rel (0) target = $region5
    $region4: #{tpu_custom_call.1} parent=1 // pred_region
      _
    $region5: #{tpu_custom_call.1} parent=1 // pred_fallthru
      _
    // Predicated region
    $region6: #{tpu_custom_call.1} parent=1 // pred_check
      _
    $region7: #{tpu_custom_call.1} parent=1 // pred_check_branch
      %21 = sbr.rel (0) target = $region9
    $region8: #{tpu_custom_call.1} parent=1 // pred_region
      %23 = vsyncadd [#allocation3], 0
      %s25 = sshll.u32 %s1, 4
      %s26 = int_to_ptr.hbm [resolvable:$true] %s25
      %s27 = sshll.u32 [#allocation2], 4
      %s28 = int_to_ptr.vmem [resolvable:$true] %s27
      %30 = dma.hbm_to_vmem [thread:$0]  %s26, 128, %s28, [#allocation3]
    $region9: #{tpu_custom_call.1} parent=1 // pred_fallthru
      _
    // Predicated region
    $region10: #{tpu_custom_call.1} parent=1 // pred_check
      _
    $region11: #{tpu_custom_call.1} parent=1 // pred_check_branch
      %32 = sbr.rel (0) target = $region13
    $region12: #{tpu_custom_call.1} parent=1 // pred_region
      _
    $region13: #{tpu_custom_call.1} parent=1 // pred_fallthru
      _
    // Predicated region
    $region14: #{tpu_custom_call.1} parent=1 // pred_check
      _
    $region15: #{tpu_custom_call.1} parent=1 // pred_check_branch
      %34 = sbr.rel (0) target = $region17
    $region16: #{tpu_custom_call.1} parent=1 // pred_region
      _
    $region17: #{tpu_custom_call.1} parent=1 // pred_fallthru
      _
    // Predicated region
    $region18: #{tpu_custom_call.1} parent=1 // pred_check
      _
    $region19: #{tpu_custom_call.1} parent=1 // pred_check_branch
      %36 = sbr.rel (0) target = $region21
    $region20: #{tpu_custom_call.1} parent=1 // pred_region
      _
    $region21: #{tpu_custom_call.1} parent=1 // pred_fallthru
      _
    // Predicated region
    $region22: #{tpu_custom_call.1} parent=1 // pred_check
      _
    $region23: #{tpu_custom_call.1} parent=1 // pred_check_branch
      %38 = sbr.rel (0) target = $region25
    $region24: #{tpu_custom_call.1} parent=1 // pred_region
      %40 = vsyncadd [#allocation6], 0
      %s42 = sshll.u32 %s5, 4
      %s43 = int_to_ptr.hbm [resolvable:$true] %s42
      %s44 = sshll.u32 [#allocation5], 4
      %s45 = int_to_ptr.vmem [resolvable:$true] %s44
      %47 = dma.hbm_to_vmem [thread:$0]  %s43, 128, %s45, [#allocation6]
    $region25: #{tpu_custom_call.1} parent=1 // pred_fallthru
      _
    // Predicated region
    $region26: #{tpu_custom_call.1} parent=1 // pred_check
      _
    $region27: #{tpu_custom_call.1} parent=1 // pred_check_branch
      %49 = sbr.rel (0) target = $region29
    $region28: #{tpu_custom_call.1} parent=1 // pred_region
      _
    $region29: #{tpu_custom_call.1} parent=1 // pred_fallthru
      _
    // Predicated region
    $region30: #{tpu_custom_call.1} parent=1 // pred_check
      _
    $region31: #{tpu_custom_call.1} parent=1 // pred_check_branch
      %51 = sbr.rel (0) target = $region33
    $region32: #{tpu_custom_call.1} parent=1 // pred_region
      _
    $region33: #{tpu_custom_call.1} parent=1 // pred_fallthru
      _
    // Predicated region
    $region34: #{tpu_custom_call.1} parent=1 // pred_check
      _
    $region35: #{tpu_custom_call.1} parent=1 // pred_check_branch
      %53 = sbr.rel (0) target = $region37
    $region36: #{tpu_custom_call.1} parent=1 // pred_region
      _
    $region37: #{tpu_custom_call.1} parent=1 // pred_fallthru
      _
    // Predicated region
    $region38: #{tpu_custom_call.1} parent=1 // pred_check
      _
    $region39: #{tpu_custom_call.1} parent=1 // pred_check_branch
      %55 = sbr.rel (0) target = $region41
    $region40: #{tpu_custom_call.1} parent=1 // pred_region
      %57 = vsyncadd [#allocation6], 0
      %s58 = sshll.u32 %s9, 4
      %s59 = int_to_ptr.hbm [resolvable:$true] %s58
      %s60 = sshll.u32 [#allocation7], 4
      %s61 = int_to_ptr.vmem [resolvable:$true] %s60
      %66 = dma.hbm_to_vmem [thread:$0]  %s59, 512, %s61, [#allocation6], 256, 256, 16
    $region41: #{tpu_custom_call.1} parent=1 // pred_fallthru
      _
    // Predicated region
    $region42: #{tpu_custom_call.1} parent=1 // pred_check
      _
    $region43: #{tpu_custom_call.1} parent=1 // pred_check_branch
      %68 = sbr.rel (0) target = $region45
    $region44: #{tpu_custom_call.1} parent=1 // pred_region
      %70 = dma.done [#allocation3], 128
    $region45: #{tpu_custom_call.1} parent=1 // pred_fallthru
      _
    // Predicated region
    $region46: #{tpu_custom_call.1} parent=1 // pred_check
      _
    $region47: #{tpu_custom_call.1} parent=1 // pred_check_branch
      %72 = sbr.rel (0) target = $region49
    $region48: #{tpu_custom_call.1} parent=1 // pred_region
      %74 = dma.done [#allocation6], 128
    $region49: #{tpu_custom_call.1} parent=1 // pred_fallthru
      _
    // Predicated region
    $region50: #{tpu_custom_call.1} parent=1 // pred_check
      _
    $region51: #{tpu_custom_call.1} parent=1 // pred_check_branch
      %76 = sbr.rel (0) target = $region53
    $region52: #{tpu_custom_call.1} parent=1 // pred_region
      %78 = dma.done [#allocation6], 512
    $region53: #{tpu_custom_call.1} parent=1 // pred_fallthru
      _
    %v79 = vld [vmem:[%s0] sm:$0xff]
    %v80 = vld [vmem:[%s0 + $0x8] sm:$0xff]
    %v81 = vld [vmem:[#allocation7] sm:$0xff]
    %v82 = vld [vmem:[#allocation7 + $0x8] sm:$0xff]
    %v83 = vld [vmem:[#allocation7 + $0x10] sm:$0x1]
    %v84 = vld [vmem:[#allocation7 + $0x18] sm:$0x1]
    %v85 = vld [vmem:[#allocation2] sm:$0xff]
    %v86 = vld [vmem:[%s2] sm:$0xff]
    %89 = vrot.lane.b32.xlu0 %v79, 17
    %v90 = vpop.permute.xlu0 %89
    %91 = vrot.lane.b32.xlu0 %v80, 17
    %v92 = vpop.permute.xlu0 %91
    %vm93 = vcmask 138240
    %v94 = vsel %vm93, %v90, %v92
    %v97 = vsel %vm93, 0.0, %v90
    %v98 = vperm.slane %v81, 0
    %v99 = vperm.slane %v82, 0
    %v100 = vmul.f32 %v97, %v98
    %v101 = vmul.f32 %v94, %v99
    %102 = vrot.lane.b32.xlu0 %v79, 16
    %v103 = vpop.permute.xlu0 %102
    %104 = vrot.lane.b32.xlu0 %v80, 16
    %v105 = vpop.permute.xlu0 %104
    %vm106 = vcmask 130048
    %v107 = vsel %vm106, %v103, %v105
    %v110 = vsel %vm106, 0.0, %v103
    %v111 = vperm.slane %v81, 1
    %v112 = vperm.slane %v82, 1
    %v113 = vmul.f32 %v110, %v111
    %v114 = vmul.f32 %v107, %v112
    %115 = vrot.lane.b32.xlu0 %v79, 15
    %v116 = vpop.permute.xlu0 %115
    %117 = vrot.lane.b32.xlu0 %v80, 15
    %v118 = vpop.permute.xlu0 %117
    %vm119 = vcmask 121856
    %v120 = vsel %vm119, %v116, %v118
    %v123 = vsel %vm119, 0.0, %v116
    %v124 = vperm.slane %v81, 2
    %v125 = vperm.slane %v82, 2
    %v126 = vmul.f32 %v123, %v124
    %v127 = vmul.f32 %v120, %v125
    %128 = vrot.lane.b32.xlu0 %v79, 1
    %v129 = vpop.permute.xlu0 %128
    %130 = vrot.lane.b32.xlu0 %v80, 1
    %v131 = vpop.permute.xlu0 %130
    %vm132 = vcmask 7168
    %v133 = vsel %vm132, %v129, %v131
    %v136 = vsel %vm132, 0.0, %v129
    %v137 = vperm.slane %v81, 3
    %v138 = vperm.slane %v82, 3
    %v139 = vmul.f32 %v136, %v137
    %v140 = vmul.f32 %v133, %v138
    %v141 = vperm.slane %v81, 4
    %v142 = vperm.slane %v82, 4
    %v143 = vmul.f32 %v79, %v141
    %v144 = vmul.f32 %v80, %v142
    %145 = vrot.lane.b32.xlu0 %v79, 127
    %v146 = vpop.permute.xlu0 %145
    %147 = vrot.lane.b32.xlu0 %v80, 127
    %v148 = vpop.permute.xlu0 %147
    %vm149 = vcmask 1039360
    %v150 = vsel %vm149, %v146, %v148
    %v153 = vsel %vm149, %v148, 0.0
    %v154 = vperm.slane %v81, 5
    %v155 = vperm.slane %v82, 5
    %v156 = vmul.f32 %v150, %v154
    %v157 = vmul.f32 %v153, %v155
    %158 = vrot.lane.b32.xlu0 %v79, 113
    %v159 = vpop.permute.xlu0 %158
    %160 = vrot.lane.b32.xlu0 %v80, 113
    %v161 = vpop.permute.xlu0 %160
    %vm162 = vcmask 924672
    %v163 = vsel %vm162, %v159, %v161
    %v166 = vsel %vm162, %v161, 0.0
    %v167 = vperm.slane %v81, 6
    %v168 = vperm.slane %v82, 6
    %v169 = vmul.f32 %v163, %v167
    %v170 = vmul.f32 %v166, %v168
    %171 = vrot.lane.b32.xlu0 %v79, 112
    %v172 = vpop.permute.xlu0 %171
    %173 = vrot.lane.b32.xlu0 %v80, 112
    %v174 = vpop.permute.xlu0 %173
    %vm175 = vcmask 916480
    %v176 = vsel %vm175, %v172, %v174
    %v179 = vsel %vm175, %v174, 0.0
    %v180 = vperm.slane %v81, 7
    %v181 = vperm.slane %v82, 7
    %v182 = vmul.f32 %v176, %v180
    %v183 = vmul.f32 %v179, %v181
    %184 = vrot.lane.b32.xlu0 %v79, 111
    %v185 = vpop.permute.xlu0 %184
    %186 = vrot.lane.b32.xlu0 %v80, 111
    %v187 = vpop.permute.xlu0 %186
    %vm188 = vcmask 908288
    %v189 = vsel %vm188, %v185, %v187
    %v192 = vsel %vm188, %v187, 0.0
    %v193 = vperm.slane %v83, 0
    %v194 = vperm.slane %v84, 0
    %v195 = vmul.f32 %v189, %v193
    %v196 = vmul.f32 %v192, %v194
    %198 = vset.pattern.permute.xlu0 0
    %199 = vperm.xlu0 %198, %v86
    %v200 = vpop.permute.xlu0 %199
    %vm202 = vcmask 588800
    %v204 = vsel %vm202, %v85, 0
    %206 = vmatpush.msra.mxu0 0.0
    %207 = vmatpush.msra.mxu0 0.0
    %208 = vmatpush.msra.mxu0 0.0
    %209 = vmatpush.msra.mxu0 0.0
    %210 = vmatpush.msra.mxu0 0.0
    %211 = vmatpush.msra.mxu0 0.0
    %212 = vmatpush.msra.mxu0 0.0
    %213 = vmatpush.msra.mxu0 %v195
    %214 = vmatpush.msra.mxu0 %v182
    %215 = vmatpush.msra.mxu0 %v169
    %216 = vmatpush.msra.mxu0 %v156
    %217 = vmatpush.msra.mxu0 %v143
    %218 = vmatpush.msra.mxu0 %v139
    %219 = vmatpush.msra.mxu0 %v126
    %220 = vmatpush.msra.mxu0 %v113
    %221 = vmatpush.msra.mxu0 %v100
    %222 = vmatmul.f32.gmra.mxu0 %v204
    %v223 = vpop.f32.mrf.mxu0
    %v224 = vadd.f32 %v200, %v223
    %225 = vdwg.mxu0
    %226 = vmatpush.msra.mxu0 0.0
    %227 = vmatpush.msra.mxu0 0.0
    %228 = vmatpush.msra.mxu0 0.0
    %229 = vmatpush.msra.mxu0 0.0
    %230 = vmatpush.msra.mxu0 0.0
    %231 = vmatpush.msra.mxu0 0.0
    %232 = vmatpush.msra.mxu0 0.0
    %233 = vmatpush.msra.mxu0 %v196
    %234 = vmatpush.msra.mxu0 %v183
    %235 = vmatpush.msra.mxu0 %v170
    %236 = vmatpush.msra.mxu0 %v157
    %237 = vmatpush.msra.mxu0 %v144
    %238 = vmatpush.msra.mxu0 %v140
    %239 = vmatpush.msra.mxu0 %v127
    %240 = vmatpush.msra.mxu0 %v114
    %241 = vmatpush.msra.mxu0 %v101
    %242 = vmatmul.f32.gmra.mxu0 %v204
    %v243 = vpop.f32.mrf.mxu0
    %v244 = vadd.f32 %v200, %v243
    %245 = vdwg.mxu0
    %v246 = vadd.f32 %v224, %v244
    %247 = vadd.xlane.f32.xlu0 %v246
    %v248 = vpop.xlane.xlu0 %247
    %v249 = vmul.f32 %v224, %v224
    %v250 = vmul.f32 %v244, %v244
    %v251 = vadd.f32 %v249, %v250
    %252 = vadd.xlane.f32.xlu0 %v251
    %v253 = vpop.xlane.xlu0 %252
    %v255 = vrot.slane %v248, 4
    %v257 = vadd.f32 %v248, %v255
    %v259 = vrot.slane %v253, 4
    %v261 = vadd.f32 %v253, %v259
    %v262 = vmul.f32 %v257, 0.001953125
    %v263 = vmul.f32 %v261, 0.001953125
    %v264 = vmul.f32 %v262, %v262
    %v265 = vsub.f32 %v263, %v264
    %v266 = vadd.f32 %v265, 1e-05
    %v267 = vrsqrt.pop %v266
    %v268 = vmul.f32 %v267, %v266
    %v269 = vmul.f32 %v268, %v267
    %v270 = vmul.f32 0.5, %v269
    %v271 = vsub.f32 1.5, %v270
    %v272 = vmul.f32 %v267, %v271
    %vm273 = vweird.f32 %v266
    %vm274 = vweird.f32 %v267
    %vm275 = vmor %vm273, %vm274
    %v276 = vsel %vm275, %v267, %v272
    %v277 = vld [vmem:[%s3] sm:$0xf]
    %v278 = vmul.f32 %v276, %v277
    %v279 = vld [vmem:[%s4] sm:$0xf]
    %v280 = vmul.f32 %v262, %v278
    %v281 = vsub.f32 %v279, %v280
    %v283 = vrot.slane %v278, 4
    %vm285 = vcmask 1043456
    %v286 = vsel %vm285, %v278, %v283
    %v288 = vrot.slane %v281, 4
    %v290 = vsel %vm285, %v281, %v288
    %292 = vset.pattern.permute.xlu0 0
    %293 = vperm.xlu0 %292, %v286
    %v294 = vpop.permute.xlu0 %293
    %v296 = vmul.f32 %v224, %v294
    %v297 = vmul.f32 %v244, %v294
    %299 = vset.pattern.permute.xlu0 0
    %300 = vperm.xlu0 %299, %v290
    %v301 = vpop.permute.xlu0 %300
    %v303 = vadd.f32 %v296, %v301
    %v304 = vadd.f32 %v297, %v301
    %v305 = vmax.f32 %v303, 0.0
    %v306 = vmax.f32 %v304, 0.0
    %v307 = vld [vmem:[#allocation5] sm:$0xff]
    %v308 = vld [vmem:[%s6] sm:$0xff]
    %311 = vrot.lane.b32.xlu0 %v305, 17
    %v312 = vpop.permute.xlu0 %311
    %313 = vrot.lane.b32.xlu0 %v306, 17
    %v314 = vpop.permute.xlu0 %313
    %v315 = vsel %vm93, %v312, %v314
    %v318 = vsel %vm93, 0.0, %v312
    %v319 = vmul.f32 %v318, %v98
    %v320 = vmul.f32 %v315, %v99
    %321 = vrot.lane.b32.xlu0 %v305, 16
    %v322 = vpop.permute.xlu0 %321
    %323 = vrot.lane.b32.xlu0 %v306, 16
    %v324 = vpop.permute.xlu0 %323
    %v325 = vsel %vm106, %v322, %v324
    %v328 = vsel %vm106, 0.0, %v322
    %v329 = vmul.f32 %v328, %v111
    %v330 = vmul.f32 %v325, %v112
    %331 = vrot.lane.b32.xlu0 %v305, 15
    %v332 = vpop.permute.xlu0 %331
    %333 = vrot.lane.b32.xlu0 %v306, 15
    %v334 = vpop.permute.xlu0 %333
    %v335 = vsel %vm119, %v332, %v334
    %v338 = vsel %vm119, 0.0, %v332
    %v339 = vmul.f32 %v338, %v124
    %v340 = vmul.f32 %v335, %v125
    %341 = vrot.lane.b32.xlu0 %v305, 1
    %v342 = vpop.permute.xlu0 %341
    %343 = vrot.lane.b32.xlu0 %v306, 1
    %v344 = vpop.permute.xlu0 %343
    %v345 = vsel %vm132, %v342, %v344
    %v348 = vsel %vm132, 0.0, %v342
    %v349 = vmul.f32 %v348, %v137
    %v350 = vmul.f32 %v345, %v138
    %v351 = vmul.f32 %v305, %v141
    %v352 = vmul.f32 %v306, %v142
    %353 = vrot.lane.b32.xlu0 %v305, 127
    %v354 = vpop.permute.xlu0 %353
    %355 = vrot.lane.b32.xlu0 %v306, 127
    %v356 = vpop.permute.xlu0 %355
    %v357 = vsel %vm149, %v354, %v356
    %v360 = vsel %vm149, %v356, 0.0
    %v361 = vmul.f32 %v357, %v154
    %v362 = vmul.f32 %v360, %v155
    %363 = vrot.lane.b32.xlu0 %v305, 113
    %v364 = vpop.permute.xlu0 %363
    %365 = vrot.lane.b32.xlu0 %v306, 113
    %v366 = vpop.permute.xlu0 %365
    %v367 = vsel %vm162, %v364, %v366
    %v370 = vsel %vm162, %v366, 0.0
    %v371 = vmul.f32 %v367, %v167
    %v372 = vmul.f32 %v370, %v168
    %373 = vrot.lane.b32.xlu0 %v305, 112
    %v374 = vpop.permute.xlu0 %373
    %375 = vrot.lane.b32.xlu0 %v306, 112
    %v376 = vpop.permute.xlu0 %375
    %v377 = vsel %vm175, %v374, %v376
    %v380 = vsel %vm175, %v376, 0.0
    %v381 = vmul.f32 %v377, %v180
    %v382 = vmul.f32 %v380, %v181
    %383 = vrot.lane.b32.xlu0 %v305, 111
    %v384 = vpop.permute.xlu0 %383
    %385 = vrot.lane.b32.xlu0 %v306, 111
    %v386 = vpop.permute.xlu0 %385
    %v387 = vsel %vm188, %v384, %v386
    %v390 = vsel %vm188, %v386, 0.0
    %v391 = vmul.f32 %v387, %v193
    %v392 = vmul.f32 %v390, %v194
    %394 = vset.pattern.permute.xlu0 0
    %395 = vperm.xlu0 %394, %v308
    %v396 = vpop.permute.xlu0 %395
    %v399 = vsel %vm202, %v307, 0
    %401 = vmatpush.msra.mxu0 0.0
    %402 = vmatpush.msra.mxu0 0.0
    %403 = vmatpush.msra.mxu0 0.0
    %404 = vmatpush.msra.mxu0 0.0
    %405 = vmatpush.msra.mxu0 0.0
    %406 = vmatpush.msra.mxu0 0.0
    %407 = vmatpush.msra.mxu0 0.0
    %408 = vmatpush.msra.mxu0 %v391
    %409 = vmatpush.msra.mxu0 %v381
    %410 = vmatpush.msra.mxu0 %v371
    %411 = vmatpush.msra.mxu0 %v361
    %412 = vmatpush.msra.mxu0 %v351
    %413 = vmatpush.msra.mxu0 %v349
    %414 = vmatpush.msra.mxu0 %v339
    %415 = vmatpush.msra.mxu0 %v329
    %416 = vmatpush.msra.mxu0 %v319
    %417 = vmatmul.f32.gmra.mxu0 %v399
    %v418 = vpop.f32.mrf.mxu0
    %v419 = vadd.f32 %v396, %v418
    %420 = vdwg.mxu0
    %421 = vmatpush.msra.mxu0 0.0
    %422 = vmatpush.msra.mxu0 0.0
    %423 = vmatpush.msra.mxu0 0.0
    %424 = vmatpush.msra.mxu0 0.0
    %425 = vmatpush.msra.mxu0 0.0
    %426 = vmatpush.msra.mxu0 0.0
    %427 = vmatpush.msra.mxu0 0.0
    %428 = vmatpush.msra.mxu0 %v392
    %429 = vmatpush.msra.mxu0 %v382
    %430 = vmatpush.msra.mxu0 %v372
    %431 = vmatpush.msra.mxu0 %v362
    %432 = vmatpush.msra.mxu0 %v352
    %433 = vmatpush.msra.mxu0 %v350
    %434 = vmatpush.msra.mxu0 %v340
    %435 = vmatpush.msra.mxu0 %v330
    %436 = vmatpush.msra.mxu0 %v320
    %437 = vmatmul.f32.gmra.mxu0 %v399
    %v438 = vpop.f32.mrf.mxu0
    %v439 = vadd.f32 %v396, %v438
    %440 = vdwg.mxu0
    %v441 = vadd.f32 %v419, %v439
    %442 = vadd.xlane.f32.xlu0 %v441
    %v443 = vpop.xlane.xlu0 %442
    %v444 = vmul.f32 %v419, %v419
    %v445 = vmul.f32 %v439, %v439
    %v446 = vadd.f32 %v444, %v445
    %447 = vadd.xlane.f32.xlu0 %v446
    %v448 = vpop.xlane.xlu0 %447
    %v450 = vrot.slane %v443, 4
    %v452 = vadd.f32 %v443, %v450
    %v454 = vrot.slane %v448, 4
    %v456 = vadd.f32 %v448, %v454
    %v457 = vmul.f32 %v452, 0.001953125
    %v458 = vmul.f32 %v456, 0.001953125
    %v459 = vmul.f32 %v457, %v457
    %v460 = vsub.f32 %v458, %v459
    %v461 = vadd.f32 %v460, 1e-05
    %v462 = vrsqrt.pop %v461
    %v463 = vmul.f32 %v462, %v461
    %v464 = vmul.f32 %v463, %v462
    %v465 = vmul.f32 0.5, %v464
    %v466 = vsub.f32 1.5, %v465
    %v467 = vmul.f32 %v462, %v466
    %vm468 = vweird.f32 %v461
    %vm469 = vweird.f32 %v462
    %vm470 = vmor %vm468, %vm469
    %v471 = vsel %vm470, %v462, %v467
    %v472 = vld [vmem:[%s7] sm:$0xf]
    %v473 = vmul.f32 %v471, %v472
    %v474 = vld [vmem:[%s8] sm:$0xf]
    %v475 = vmul.f32 %v457, %v473
    %v476 = vsub.f32 %v474, %v475
    %v478 = vrot.slane %v473, 4
    %v480 = vsel %vm285, %v473, %v478
    %v482 = vrot.slane %v476, 4
    %v484 = vsel %vm285, %v476, %v482
    %486 = vset.pattern.permute.xlu0 0
    %487 = vperm.xlu0 %486, %v480
    %v488 = vpop.permute.xlu0 %487
    %v490 = vmul.f32 %v419, %v488
    %v491 = vmul.f32 %v439, %v488
    %493 = vset.pattern.permute.xlu0 0
    %494 = vperm.xlu0 %493, %v484
    %v495 = vpop.permute.xlu0 %494
    %v497 = vadd.f32 %v490, %v495
    %v498 = vadd.f32 %v491, %v495
    %v499 = vadd.f32 %v79, %v497
    %v500 = vadd.f32 %v80, %v498
    %501 = vst [vmem:[#allocation8] sm:$0xff] %v499
    %502 = vst [vmem:[#allocation8 + $0x8] sm:$0xff] %v500
    // Predicated region
    $region54: #{tpu_custom_call.1} parent=1 // pred_check
      _
    $region55: #{tpu_custom_call.1} parent=1 // pred_check_branch
      %504 = sbr.rel (0) target = $region57
    $region56: #{tpu_custom_call.1} parent=1 // pred_region
      %506 = vsyncadd [#allocation4], 0
      %s508 = sshll.u32 [#allocation8], 4
      %s509 = int_to_ptr.vmem [resolvable:$true] %s508
      %s510 = sshll.u32 %s10, 4
      %s511 = int_to_ptr.hbm [resolvable:$true] %s510
      %513 = dma.vmem_to_hbm [thread:$0]  %s509, 256, %s511, [#allocation4]
    $region57: #{tpu_custom_call.1} parent=1 // pred_fallthru
      _
    // Predicated region
    $region58: #{tpu_custom_call.1} parent=1 // pred_check
      _
    $region59: #{tpu_custom_call.1} parent=1 // pred_check_branch
      %515 = sbr.rel (0) target = $region61
    $region60: #{tpu_custom_call.1} parent=1 // pred_region
      %517 = dma.done [#allocation4], 256
    $region61: #{tpu_custom_call.1} parent=1 // pred_fallthru
      _
    %518 = vsyncpa [#allocation3], 1
    %519 = vsyncpa [#allocation6], 1
    %520 = vsyncpa [#allocation4], 1

</llo_original>
